<compile_context>
chip_gen: v7x
topology: tpu7x:2x2x1
jax: 0.10.0
libtpu: 0.0.40
codegen_flags: <defaults>
</compile_context>

<pallas_src>
import functools

import jax
import jax.numpy as jnp
from jax.experimental import pallas as pl
from jax.experimental.pallas import tpu as pltpu


def _round_up(x, m):
    return ((x + m - 1) // m) * m


def _gated_attn_kernel(x_ref, wab_ref, bab_ref, wc_ref, bc_ref, a_out_ref):
    # x tile: (TILE_N, L), possibly bf16.  Fused projection -> (TILE_N, 2D) f32.
    x = x_ref[...]
    ab = jnp.dot(x, wab_ref[...], preferred_element_type=jnp.float32)
    ab = ab + bab_ref[...]                       # bias in f32

    d = wab_ref.shape[1] // 2
    a = jnp.tanh(ab[:, :d])                      # attention_a: Tanh (f32, EUP)
    b = jax.nn.sigmoid(ab[:, d:])                # attention_b: Sigmoid (f32, EUP)

    gated = (a * b).astype(wc_ref.dtype)         # gate in f32, cast for MXU

    # attention_c: (TILE_N, D) @ (D, C_pad) + bias; C padded to 128 lanes so the
    # output store is lane-dense (unmasked vst).
    A = jnp.dot(gated, wc_ref[...], preferred_element_type=jnp.float32)
    A = A + bc_ref[...]
    a_out_ref[...] = A.astype(a_out_ref.dtype)


@functools.partial(jax.jit, static_argnames=("tile_n", "use_bf16"))
def attn_net_gated(x, wa, ba, wb, bb, wc, bc, *, tile_n=1024, use_bf16=True):
    """Forward pass of Attn_Net_Gated. Returns (A, x) like the PyTorch module.

    x : (N, L) float32
    wa, wb : (L, D)     ba, bb : (1, D) or (D,)
    wc : (D, n_classes) bc : (1, n_classes) or (n_classes,)
    """
    N, L = x.shape
    D = wa.shape[1]
    C = wc.shape[1]
    C_pad = _round_up(max(C, 128), 128)          # lane-dense output width

    # ---- fuse the two gating projections: one (L, 2D) RHS for the big dot ----
    w_ab = jnp.concatenate([wa, wb], axis=1)                       # (L, 2D)
    b_ab = jnp.concatenate(
        [ba.reshape(1, D), bb.reshape(1, D)], axis=1
    ).astype(jnp.float32)                                          # (1, 2D)

    # ---- pad classifier weight/bias to a lane-dense width ----
    wc_p = jnp.zeros((D, C_pad), wc.dtype).at[:, :C].set(wc)
    bc_p = jnp.zeros((1, C_pad), jnp.float32).at[:, :C].set(
        bc.reshape(1, C).astype(jnp.float32))

    # ---- dtype for the MXU operands (bf16 inputs, f32 accumulation) ----
    mxu_dtype = jnp.bfloat16 if use_bf16 else x.dtype
    x_in = x.astype(mxu_dtype)
    w_ab = w_ab.astype(mxu_dtype)
    wc_p = wc_p.astype(mxu_dtype)

    # ---- tile over N (pad N so the grid divides evenly) ----
    tn = min(tile_n, _round_up(N, 8))            # sublane-aligned tile height
    N_pad = _round_up(N, tn)
    if N_pad != N:
        x_in = jnp.pad(x_in, ((0, N_pad - N), (0, 0)))
    grid = (N_pad // tn,)

    in_specs = [
        pl.BlockSpec((tn, L), lambda i: (i, 0)),        # x: streamed per tile
        pl.BlockSpec((L, 2 * D), lambda i: (0, 0)),     # fused w_ab: resident
        pl.BlockSpec((1, 2 * D), lambda i: (0, 0)),     # fused bias: resident
        pl.BlockSpec((D, C_pad), lambda i: (0, 0)),     # wc (padded): resident
        pl.BlockSpec((1, C_pad), lambda i: (0, 0)),     # bc (padded): resident
    ]
    out_specs = pl.BlockSpec((tn, C_pad), lambda i: (i, 0))

    A_pad = pl.pallas_call(
        _gated_attn_kernel,
        out_shape=jax.ShapeDtypeStruct((N_pad, C_pad), jnp.float32),
        grid=grid,
        in_specs=in_specs,
        out_specs=out_specs,
        compiler_params=pltpu.CompilerParams(
            # row tiles are independent -> shard across v7x's 2 TensorCores
            dimension_semantics=("parallel",),
            # large enough for tn<=2048 double-buffered x tiles + resident
            # weights, but safely under v7x's 64 MiB physical VMEM.
            vmem_limit_bytes=48 * 1024 * 1024,
        ),
    )(x_in, w_ab, b_ab, wc_p, bc_p)

    A = A_pad[:N, :C].astype(x.dtype)
    return A, x


def _reference(x, wa, ba, wb, bb, wc, bc):
    a = jnp.tanh(x @ wa + ba)
    b = jax.nn.sigmoid(x @ wb + bb)
    return (a * b) @ wc + bc


if __name__ == "__main__":
    # Small shapes consistent with the module (L=feature dim, D=hidden, n_classes).
    N, L, D, C = 8, 32, 16, 1

    key = jax.random.PRNGKey(0)
    kx, kwa, kba, kwb, kbb, kwc, kbc = jax.random.split(key, 7)

    x = jax.random.normal(kx, (N, L), dtype=jnp.float32)
    # Deterministic synthetic parameters (stored pre-transposed, see layout note).
    wa = jax.random.normal(kwa, (L, D), dtype=jnp.float32) * (1.0 / L) ** 0.5
    ba = jax.random.normal(kba, (1, D), dtype=jnp.float32) * 0.01
    wb = jax.random.normal(kwb, (L, D), dtype=jnp.float32) * (1.0 / L) ** 0.5
    bb = jax.random.normal(kbb, (1, D), dtype=jnp.float32) * 0.01
    wc = jax.random.normal(kwc, (D, C), dtype=jnp.float32) * (1.0 / D) ** 0.5
    bc = jax.random.normal(kbc, (1, C), dtype=jnp.float32) * 0.01

    A, x_out = attn_net_gated(x, wa, ba, wb, bb, wc, bc, tile_n=1024,
                              use_bf16=True)
    jax.block_until_ready((A, x_out))

    A_ref = _reference(x, wa, ba, wb, bb, wc, bc)
    assert A.shape == (N, C)
    assert x_out.shape == (N, L)
    # bf16 MXU inputs with f32 accumulation -> loosened tolerance vs f32 ref.
    assert jnp.allclose(A, A_ref, atol=2e-2, rtol=2e-2), "mismatch vs reference"
    assert jnp.array_equal(x_out, x), "x passthrough mismatch"

    # Also exercise the pure-f32 path at tight tolerance.
    A32, _ = attn_net_gated(x, wa, ba, wb, bb, wc, bc, tile_n=1024,
                            use_bf16=False)
    jax.block_until_ready(A32)
    assert jnp.allclose(A32, A_ref, atol=1e-5, rtol=1e-5), "f32 path mismatch"

    print("KERNEL_OK")
</pallas_src>

<mosaic_0001>
module attributes {stable_mosaic.version = 11 : i64} {
  func.func @_gated_attn_kernel(%arg0: i32, %arg1: memref<8x32xbf16, #tpu.memory_space<vmem>>, %arg2: memref<32x32xbf16, #tpu.memory_space<vmem>>, %arg3: memref<1x32xf32, #tpu.memory_space<vmem>>, %arg4: memref<16x128xbf16, #tpu.memory_space<vmem>>, %arg5: memref<1x128xf32, #tpu.memory_space<vmem>>, %arg6: memref<8x128xf32, #tpu.memory_space<vmem>>) attributes {dimension_semantics = [#tpu.dimension_semantics<parallel>], iteration_bounds = array<i64: 1>, scalar_prefetch = 0 : i64, scratch_operands = 0 : i64, tpu.core_type = #tpu.core_type<tc>, window_params = [{transform_indices = @transform_0, window_bounds = array<i64: 8, 32>}, {pipeline_mode = #tpu.pipeline_mode<synchronous>, transform_indices = @transform_1, window_bounds = array<i64: 32, 32>}, {pipeline_mode = #tpu.pipeline_mode<synchronous>, transform_indices = @transform_2, window_bounds = array<i64: 1, 32>}, {pipeline_mode = #tpu.pipeline_mode<synchronous>, transform_indices = @transform_3, window_bounds = array<i64: 16, 128>}, {pipeline_mode = #tpu.pipeline_mode<synchronous>, transform_indices = @transform_4, window_bounds = array<i64: 1, 128>}, {transform_indices = @transform_5, window_bounds = array<i64: 8, 128>}]} {
    %c0 = arith.constant 0 : index
    %c0_0 = arith.constant 0 : index
    %0 = vector.load %arg1[%c0, %c0_0] : memref<8x32xbf16, #tpu.memory_space<vmem>>, vector<8x32xbf16>
    %c0_1 = arith.constant 0 : index
    %c0_2 = arith.constant 0 : index
    %1 = vector.load %arg2[%c0_1, %c0_2] : memref<32x32xbf16, #tpu.memory_space<vmem>>, vector<32x32xbf16>
    %cst = arith.constant dense<0.000000e+00> : vector<8x32xf32>
    %2 = tpu.matmul %0, %1, %cst {dimension_numbers = #tpu.dot_dimension_numbers<[1], [0], [0], [1], [0, 0, 1, 1], [], []>} : vector<8x32xbf16>, vector<32x32xbf16>, vector<8x32xf32> -> vector<8x32xf32>
    %c0_3 = arith.constant 0 : index
    %c0_4 = arith.constant 0 : index
    %3 = vector.load %arg3[%c0_3, %c0_4] : memref<1x32xf32, #tpu.memory_space<vmem>>, vector<1x32xf32>
    %4 = vector.broadcast %3 : vector<1x32xf32> to vector<8x32xf32>
    %5 = arith.addf %2, %4 : vector<8x32xf32>
    %6 = vector.extract_strided_slice %5 {offsets = [0, 0], sizes = [8, 16], strides = [1, 1]} : vector<8x32xf32> to vector<8x16xf32>
    %7 = math.tanh %6 : vector<8x16xf32>
    %8 = vector.extract_strided_slice %5 {offsets = [0, 16], sizes = [8, 16], strides = [1, 1]} : vector<8x32xf32> to vector<8x16xf32>
    %9 = arith.negf %8 : vector<8x16xf32>
    %10 = math.exp %9 : vector<8x16xf32>
    %cst_5 = arith.constant 1.000000e+00 : f32
    %11 = vector.broadcast %cst_5 : f32 to vector<8x16xf32>
    %12 = arith.addf %11, %10 : vector<8x16xf32>
    %13 = arith.divf %11, %12 : vector<8x16xf32>
    %14 = arith.mulf %7, %13 : vector<8x16xf32>
    %15 = arith.truncf %14 : vector<8x16xf32> to vector<8x16xbf16>
    %c0_6 = arith.constant 0 : index
    %c0_7 = arith.constant 0 : index
    %16 = vector.load %arg4[%c0_6, %c0_7] : memref<16x128xbf16, #tpu.memory_space<vmem>>, vector<16x128xbf16>
    %cst_8 = arith.constant dense<0.000000e+00> : vector<8x128xf32>
    %17 = tpu.matmul %15, %16, %cst_8 {dimension_numbers = #tpu.dot_dimension_numbers<[1], [0], [0], [1], [0, 0, 1, 1], [], []>} : vector<8x16xbf16>, vector<16x128xbf16>, vector<8x128xf32> -> vector<8x128xf32>
    %c0_9 = arith.constant 0 : index
    %c0_10 = arith.constant 0 : index
    %18 = vector.load %arg5[%c0_9, %c0_10] : memref<1x128xf32, #tpu.memory_space<vmem>>, vector<1x128xf32>
    %19 = vector.broadcast %18 : vector<1x128xf32> to vector<8x128xf32>
    %20 = arith.addf %17, %19 : vector<8x128xf32>
    %c0_11 = arith.constant 0 : index
    %c0_12 = arith.constant 0 : index
    %21 = vector.load %arg6[%c0_11, %c0_12] : memref<8x128xf32, #tpu.memory_space<vmem>>, vector<8x128xf32>
    tpu.vector_store %arg6[%c0_11, %c0_12], %20 {strides = array<i32>} : memref<8x128xf32, #tpu.memory_space<vmem>>, vector<8x128xf32>,
    return
  }
  func.func @transform_0(%arg0: i32) -> (i32, i32) {
    %c0_i32 = arith.constant 0 : i32
    %c0_i32_0 = arith.constant 0 : i32
    return %arg0, %c0_i32 : i32, i32
  }
  func.func @transform_1(%arg0: i32) -> (i32, i32) {
    %c0_i32 = arith.constant 0 : i32
    %c0_i32_0 = arith.constant 0 : i32
    %c0_i32_1 = arith.constant 0 : i32
    return %c0_i32, %c0_i32_0 : i32, i32
  }
  func.func @transform_2(%arg0: i32) -> (i32, i32) {
    %c0_i32 = arith.constant 0 : i32
    %c0_i32_0 = arith.constant 0 : i32
    %c0_i32_1 = arith.constant 0 : i32
    return %c0_i32, %c0_i32_0 : i32, i32
  }
  func.func @transform_3(%arg0: i32) -> (i32, i32) {
    %c0_i32 = arith.constant 0 : i32
    %c0_i32_0 = arith.constant 0 : i32
    %c0_i32_1 = arith.constant 0 : i32
    return %c0_i32, %c0_i32_0 : i32, i32
  }
  func.func @transform_4(%arg0: i32) -> (i32, i32) {
    %c0_i32 = arith.constant 0 : i32
    %c0_i32_0 = arith.constant 0 : i32
    %c0_i32_1 = arith.constant 0 : i32
    return %c0_i32, %c0_i32_0 : i32, i32
  }
  func.func @transform_5(%arg0: i32) -> (i32, i32) {
    %c0_i32 = arith.constant 0 : i32
    %c0_i32_0 = arith.constant 0 : i32
    return %arg0, %c0_i32 : i32, i32
  }
}

</mosaic_0001>

<llo_original>
// kernel: attn_net_gated.1
$region0: #{attn_net_gated.1}
  #allocation0 [shape = 'u32[]', space=smem, size = 0x4, offset = 0x4, fixed_abs, tag = 'smem constant byte address 0x4 - core index']
  #allocation1 [shape = 'u32[144,128]{1,0:T(1,128)}', space=vmem, size = 0x12000, scoped, tag = 'internal scratch']
  %s0 = inlined_call_operand.vmem [shape: bf16[8,32], index: 0, kind: input, shape index: {}]
  %s1 = inlined_call_operand.vmem [shape: bf16[32,32], index: 1, kind: input, shape index: {}]
  %s2 = inlined_call_operand.vmem [shape: f32[1,32], index: 2, kind: input, shape index: {}]
  %s3 = inlined_call_operand.vmem [shape: bf16[16,128], index: 3, kind: input, shape index: {}]
  %s4 = inlined_call_operand.vmem [shape: f32[1,128], index: 4, kind: input, shape index: {}]
  %s5 = inlined_call_operand.vmem [shape: f32[8,128], index: 5, kind: output, shape index: {}]
  %s6 = sld [smem:[#allocation0]]
  $region30: #{attn_net_gated.1} parent=0
    _
  %s8 = ssub.s32 1, %s6
  %s9 = scalar_select 0, %s8, %s6
  // Predicated region
  $region2: #{attn_net_gated.1} parent=0 // pred_check
    _
  $region3: #{attn_net_gated.1} parent=0 // pred_check_branch
    %11 = sbr.rel (0) target = $region5
  $region4: #{attn_net_gated.1} parent=0 // pred_region
    _
  $region5: #{attn_net_gated.1} parent=0 // pred_fallthru
    _
  // Predicated region
  $region6: #{attn_net_gated.1} parent=0 // pred_check
    _
  $region7: #{attn_net_gated.1} parent=0 // pred_check_branch
    %13 = sbr.rel (0) target = $region9
  $region8: #{attn_net_gated.1} parent=0 // pred_region
    _
  $region9: #{attn_net_gated.1} parent=0 // pred_fallthru
    _
  // Predicated region
  $region10: #{attn_net_gated.1} parent=0 // pred_check
    _
  $region11: #{attn_net_gated.1} parent=0 // pred_check_branch
    %15 = sbr.rel (0) target = $region13
  $region12: #{attn_net_gated.1} parent=0 // pred_region
    _
  $region13: #{attn_net_gated.1} parent=0 // pred_fallthru
    _
  // Predicated region
  $region14: #{attn_net_gated.1} parent=0 // pred_check
    _
  $region15: #{attn_net_gated.1} parent=0 // pred_check_branch
    %17 = sbr.rel (0) target = $region17
  $region16: #{attn_net_gated.1} parent=0 // pred_region
    _
  $region17: #{attn_net_gated.1} parent=0 // pred_fallthru
    _
  // Predicated region
  $region18: #{attn_net_gated.1} parent=0 // pred_check
    _
  $region19: #{attn_net_gated.1} parent=0 // pred_check_branch
    %19 = sbr.rel (0) target = $region21
  $region20: #{attn_net_gated.1} parent=0 // pred_region
    _
  $region21: #{attn_net_gated.1} parent=0 // pred_fallthru
    _
  %v21 = vld [vmem:[%s0] sm:$0xf]
  %v22 = vld [vmem:[%s1] sm:$0xf]
  %v23 = vld [vmem:[%s1 + $0x4] sm:$0xf]
  %v24 = vld [vmem:[%s1 + $0x8] sm:$0xf]
  %v25 = vld [vmem:[%s1 + $0xc] sm:$0xf]
  %v26 = vld [vmem:[%s2] sm:$0x1]
  %v28 = vlaneseq
  %v29 = vshrl.u32 %v28, 7
  %v30 = vsub.s32 0, %v29
  %v31 = vrot.slane %v26, %v30
  %v37 = vunpack.c.l.b16 %v22
  %v38 = vunpack.c.l.b16 %v23
  %v39 = vunpack.c.l.b16 %v24
  %v40 = vunpack.c.l.b16 %v25
  %v41 = vpack.c.b16 %v38, %v37
  %v42 = vpack.c.b16 %v40, %v39
  %vm45 = vcmask 261120
  %v47 = vsel %vm45, %v21, 0
  %49 = vmatprep.subr.bf16.mxu0 0
  %50 = vmatpush1.bf16.msra.mxu0 %v41
  %51 = vmatprep.subr.bf16.mxu0 0
  %52 = vmatpush1.bf16.msra.mxu0 %v42
  %53 = vmatprep.subr.bf16.mxu0 0
  %54 = vmatpush1.bf16.msra.mxu0 0
  %55 = vmatprep.subr.bf16.mxu0 0
  %56 = vmatpush1.bf16.msra.mxu0 0
  %57 = vmatprep.subr.bf16.mxu0 0
  %58 = vmatpush1.bf16.msra.mxu0 0
  %59 = vmatprep.subr.bf16.mxu0 0
  %60 = vmatpush1.bf16.msra.mxu0 0
  %61 = vmatprep.subr.bf16.mxu0 0
  %62 = vmatpush1.bf16.msra.mxu0 0
  %63 = vmatprep.subr.bf16.mxu0 0
  %64 = vmatpush1.bf16.msra.mxu0 0
  %65 = vmatprep.subr.bf16.mxu0 0
  %66 = vmatpush1.bf16.msra.mxu0 0
  %67 = vmatprep.subr.bf16.mxu0 0
  %68 = vmatpush1.bf16.msra.mxu0 0
  %69 = vmatprep.subr.bf16.mxu0 0
  %70 = vmatpush1.bf16.msra.mxu0 0
  %71 = vmatprep.subr.bf16.mxu0 0
  %72 = vmatpush1.bf16.msra.mxu0 0
  %73 = vmatprep.subr.bf16.mxu0 0
  %74 = vmatpush1.bf16.msra.mxu0 0
  %75 = vmatprep.subr.bf16.mxu0 0
  %76 = vmatpush1.bf16.msra.mxu0 0
  %77 = vmatprep.subr.bf16.mxu0 0
  %78 = vmatpush1.bf16.msra.mxu0 0
  %79 = vmatprep.subr.bf16.mxu0 0
  %80 = vmatpush1.bf16.msra.mxu0 0
  %81 = vmatprep.mubr.bf16.mxu0 0
  %82 = vmatmul.mubr.bf16.gmra.mrb[0].mxu0 %v47
  %v83 = vpop.f32.mrb[0].mxu0
  %v84 = vadd.f32 %v31, %v83
  %v85 = vpop.f32.mrb[0].mxu0
  %v86 = vpop.f32.mrb[0].mxu0
  %v87 = vpop.f32.mrb[0].mxu0
  %88 = vdwg.mxu0
  %v89 = vtanh.pop %v84
  %v90 = vxor.u32 %v84, 2147483648
  %v91 = vmul.f32 %v90, 1.442695
  %v92 = vpow.pop %v91
  %v93 = vadd.f32 %v92, 1.0
  %v94 = vrcp.pop %v93
  %v95 = vmul.f32 1.0, %v94
  %97 = vrot.lane.b32.xlu0 %v95, 112
  %v98 = vpop.permute.xlu0 %97
  %v100 = vmul.f32 %v89, %v98
  %v101 = vpack.c.bf16 %v100, %v100
  %v102 = vld [vmem:[%s3] sm:$0xf]
  %v103 = vld [vmem:[%s3 + $0x4] sm:$0xf]
  %v104 = vld [vmem:[%s4] sm:$0x1]
  %v106 = vlaneseq
  %v107 = vshrl.u32 %v106, 7
  %v108 = vsub.s32 0, %v107
  %v109 = vrot.slane %v104, %v108
  %v113 = vunpack.c.l.b16 %v102
  %v114 = vunpack.c.l.b16 %v103
  %v115 = vpack.c.b16 %v114, %v113
  %vm117 = vcmask 130048
  %v119 = vsel %vm117, %v101, 0
  %121 = vmatprep.subr.bf16.mxu0 0
  %122 = vmatpush1.bf16.msra.mxu0 %v115
  %123 = vmatprep.subr.bf16.mxu0 0
  %124 = vmatpush1.bf16.msra.mxu0 0
  %125 = vmatprep.subr.bf16.mxu0 0
  %126 = vmatpush1.bf16.msra.mxu0 0
  %127 = vmatprep.subr.bf16.mxu0 0
  %128 = vmatpush1.bf16.msra.mxu0 0
  %129 = vmatprep.subr.bf16.mxu0 0
  %130 = vmatpush1.bf16.msra.mxu0 0
  %131 = vmatprep.subr.bf16.mxu0 0
  %132 = vmatpush1.bf16.msra.mxu0 0
  %133 = vmatprep.subr.bf16.mxu0 0
  %134 = vmatpush1.bf16.msra.mxu0 0
  %135 = vmatprep.subr.bf16.mxu0 0
  %136 = vmatpush1.bf16.msra.mxu0 0
  %137 = vmatprep.subr.bf16.mxu0 0
  %138 = vmatpush1.bf16.msra.mxu0 0
  %139 = vmatprep.subr.bf16.mxu0 0
  %140 = vmatpush1.bf16.msra.mxu0 0
  %141 = vmatprep.subr.bf16.mxu0 0
  %142 = vmatpush1.bf16.msra.mxu0 0
  %143 = vmatprep.subr.bf16.mxu0 0
  %144 = vmatpush1.bf16.msra.mxu0 0
  %145 = vmatprep.subr.bf16.mxu0 0
  %146 = vmatpush1.bf16.msra.mxu0 0
  %147 = vmatprep.subr.bf16.mxu0 0
  %148 = vmatpush1.bf16.msra.mxu0 0
  %149 = vmatprep.subr.bf16.mxu0 0
  %150 = vmatpush1.bf16.msra.mxu0 0
  %151 = vmatprep.subr.bf16.mxu0 0
  %152 = vmatpush1.bf16.msra.mxu0 0
  %153 = vmatprep.mubr.bf16.mxu0 0
  %154 = vmatmul.mubr.bf16.gmra.mrb[0].mxu0 %v119
  %v155 = vpop.f32.mrb[0].mxu0
  %v156 = vadd.f32 %v109, %v155
  %v157 = vpop.f32.mrb[0].mxu0
  %v158 = vpop.f32.mrb[0].mxu0
  %v159 = vpop.f32.mrb[0].mxu0
  %160 = vdwg.mxu0
  %161 = vst [vmem:[%s5] sm:$0xff] %v156
  // Predicated region
  $region22: #{attn_net_gated.1} parent=0 // pred_check
    _
  $region23: #{attn_net_gated.1} parent=0 // pred_check_branch
    %163 = sbr.rel (0) target = $region25
  $region24: #{attn_net_gated.1} parent=0 // pred_region
    _
  $region25: #{attn_net_gated.1} parent=0 // pred_fallthru
    _
  // Predicated region
  $region26: #{attn_net_gated.1} parent=0 // pred_check
    _
  $region27: #{attn_net_gated.1} parent=0 // pred_check_branch
    %165 = sbr.rel (0) target = $region29
  $region28: #{attn_net_gated.1} parent=0 // pred_region
    _
  $region29: #{attn_net_gated.1} parent=0 // pred_fallthru
    _

</llo_original>
